<compile_context>
chip_gen: v7x
topology: tpu7x:2x2x1
jax: 0.10.0
libtpu: 0.0.40
codegen_flags: <defaults>
</compile_context>

<pallas_src>
import jax
import jax.numpy as jnp
from jax.experimental import pallas as pl
from jax.experimental.pallas import tpu as pltpu

_MiB = 1024 * 1024


# -----------------------------------------------------------------------------
# Kernels
# -----------------------------------------------------------------------------
def _transpose_kernel(x_ref, o_ref):
    # (LB, TM, TN) -> (LB, TN, TM): minor-dim swap (XLU path), pure relayout.
    o_ref[...] = jnp.transpose(x_ref[...], (0, 2, 1))


def _transpose_lane_dense_kernel(x_ref, o_ref):
    # (LB, M, TN) -> (LB, TN*M//128, 128).  Same bytes as the (LB, TN, M)
    # transpose but presented lane-dense, so stores are unmasked full-width
    # vst and the writeback DMA is dense when M < 128.
    t = jnp.transpose(x_ref[...], (0, 2, 1))
    o_ref[...] = t.reshape(o_ref.shape)


# -----------------------------------------------------------------------------
# Small helpers
# -----------------------------------------------------------------------------
def _round_up(x, k):
    return -(-x // k) * k


def _cdiv(a, b):
    return -(-a // b)


def _sublane(itemsize):
    # Sublane extent of the native (sublane, 128) vreg tile: 8 for 32-bit,
    # 16 for 16-bit, 32 for 8-bit dtypes.
    return max(8, 32 // max(int(itemsize), 1))


def _padded_block_bytes(lb, rows, cols, itemsize):
    # Physical VMEM footprint of a (lb, rows, cols) block: cols -> lanes
    # (padded to 128), rows -> sublanes (padded to the packed sublane tile).
    subl = _sublane(itemsize)
    return lb * _round_up(max(rows, 1), subl) * _round_up(max(cols, 1), 128) * itemsize


_VMEM_CAP = None


def _vmem_capacity_bytes():
    global _VMEM_CAP
    if _VMEM_CAP is None:
        try:
            _VMEM_CAP = int(pltpu.get_tpu_info().vmem_capacity_bytes)
        except Exception:
            _VMEM_CAP = 64 * _MiB          # conservative (v7x-sized) default
    return _VMEM_CAP


# -----------------------------------------------------------------------------
# Import-time capability probe for the lane-dense relayout (per dtype width)
# -----------------------------------------------------------------------------
_LANE_DENSE_OK = {}   # itemsize -> bool; populated once, eagerly, at import.


def _probe_lane_dense(dtype):
    """Compile + run a tiny lane-dense kernel and verify numerics.

    Runs eagerly at import time (never under a jit trace), so a trace context
    can never cache a spurious False (the previous version's bug).
    """
    try:
        itemsize = jnp.dtype(dtype).itemsize
        m, tn, lb = _sublane(itemsize), 256, 2
        r = (tn * m) // 128
        x = jnp.arange(lb * m * tn, dtype=jnp.float32).astype(dtype).reshape(lb, m, tn)
        y = pl.pallas_call(
            _transpose_lane_dense_kernel,
            out_shape=jax.ShapeDtypeStruct((lb, r, 128), dtype),
            grid=(1, 1),
            in_specs=[pl.BlockSpec((lb, m, tn), lambda li, ni: (li, 0, ni))],
            out_specs=pl.BlockSpec((lb, r, 128), lambda li, ni: (li, ni, 0)),
        )(x)
        ref = jnp.transpose(x, (0, 2, 1)).reshape(lb, r, 128)
        return bool(jnp.array_equal(jax.block_until_ready(y), ref))
    except Exception:
        return False


def _run_probes():
    try:
        if jax.devices()[0].platform != "tpu":
            return
    except Exception:
        return
    # 32-bit (f32/i32) and 16-bit (bf16/f16) widths.  int8 stays on the plain
    # path.  TODO(synk): int8 lane-dense needs a verified packed relayout
    # (pltpu.bitcast 4x i8 -> u32) before it is worth enabling.
    for dt in (jnp.float32, jnp.bfloat16):
        _LANE_DENSE_OK[jnp.dtype(dt).itemsize] = _probe_lane_dense(dt)


_run_probes()


# -----------------------------------------------------------------------------
# Tiling plan
# -----------------------------------------------------------------------------
def _plan(lead, m, n, dtype):
    """Choose (lane_dense, LB, TM, TN, vmem_limit) for (lead,M,N)->(lead,N,M)."""
    itemsize = jnp.dtype(dtype).itemsize
    subl = _sublane(itemsize)
    cap = _vmem_capacity_bytes()
    # Per-generation padded-input-block target: ~4 MiB on 64-MiB-VMEM parts
    # (v7x), ~8 MiB on 128-MiB parts (v5e/v6e); amortizes the ~0.35 us/step
    # fixed cost while keeping the double-buffered working set well inside VMEM.
    target = 4 * _MiB if cap <= 96 * _MiB else 8 * _MiB
    # Dtype-aware minimum TN so each contiguous HBM read run is >= 512 B.
    min_tn = max(128, 512 // itemsize)

    lane_dense = (
        _LANE_DENSE_OK.get(itemsize, False)
        and 0 < m < 128
        and m % subl == 0
        and n % 128 == 0
    )

    tm, tn = m, n
    if lane_dense:
        # Largest multiple-of-128 divisor of N whose padded input block and
        # dense output block both fit the budget (divisibility keeps every
        # lane-dense output block a fully-valid contiguous slab).
        row_bytes = _round_up(m, subl) * itemsize
        tn_cap = min(
            n,
            max(128, (target // row_bytes) // 128 * 128),
            max(128, ((2 * target) // max(m * itemsize, 1)) // 128 * 128),
        )
        d = (tn_cap // 128) * 128
        while d >= 128 and n % d != 0:
            d -= 128
        if d >= 128 and n // d <= 512:
            tn = d
        else:
            lane_dense = False      # degenerate divisor -> plain cdiv tiling

    if not lane_dense:
        # M tile: keep full M when it fits next to a min_tn-wide block; else
        # tile in multiples of 128 (the output block's last dim must be
        # lane-aligned whenever it is not the full M extent).
        if m <= 128 or _padded_block_bytes(1, m, min_tn, itemsize) <= target:
            tm = m
        else:
            tm = max(128, (target // (min_tn * itemsize)) // 128 * 128)
            if tm >= m:
                tm = m
        # N tile: budget BOTH the padded input block and the lane-padded
        # output block (a (TN, TM<128) output tile occupies TN x 128 lanes).
        in_row_bytes = _round_up(tm, subl) * itemsize
        out_col_bytes = _round_up(tm, 128) * itemsize
        tn_cap = min(target // in_row_bytes, (2 * target) // out_col_bytes)
        tn = max(128, (tn_cap // 128) * 128)
        if tn >= n:
            tn = n                  # full extent: always a legal block dim

    def _blocks(lb_):
        if lane_dense:
            r = (tn * m) // 128
            return (_padded_block_bytes(lb_, m, tn, itemsize),
                    _padded_block_bytes(lb_, r, 128, itemsize))
        return (_padded_block_bytes(lb_, tm, tn, itemsize),
                _padded_block_bytes(lb_, tn, tm, itemsize))

    # LB: pack lead indices per step when blocks are tiny (amortize fixed
    # per-step cost) without exceeding the pipelined-buffer budget.
    in1, out1 = _blocks(1)
    pair = in1 + out1
    min_step_bytes = max(512 * 1024, target // 8)
    lb = 1
    if lead > 1 and pair < min_step_bytes:
        lb = min(lead,
                 max(1, min_step_bytes // max(pair, 1)),
                 max(1, (3 * target) // max(pair, 1)))

    # Guarantee enough grid steps for the v7x megacore (2 TCs) when the tensor
    # is big enough for the split to matter.
    if lead * m * n * itemsize >= 4 * _MiB:
        guard = 0
        while _cdiv(lead, lb) * _cdiv(m, tm) * _cdiv(n, tn) < 4 and guard < 64:
            guard += 1
            if lb > 1:
                lb = max(1, lb // 2)
                continue
            if lane_dense:
                d = tn - 128
                while d >= 128 and n % d != 0:
                    d -= 128
                if 128 <= d < tn:
                    tn = d
                    continue
                break
            if tn > 128 and n > 128:
                tn = max(128, ((tn // 2) // 128) * 128)
                continue
            if m > 128 and tm > 128:
                tm = max(128, ((tm // 2) // 128) * 128)
                continue
            break

    # VMEM limit from the *padded* double-buffered working set, clamped to the
    # generation's physical capacity minus headroom for Mosaic scratch.
    in_b, out_b = _blocks(lb)
    needed = 2 * (in_b + out_b)
    vmem_limit = int(min(max(32 * _MiB, needed + 4 * _MiB),
                         max(cap - 8 * _MiB, 16 * _MiB)))
    return lane_dense, lb, tm, tn, vmem_limit


# -----------------------------------------------------------------------------
# Pallas-backed batched 2-D transpose: (lead, M, N) -> (lead, N, M)
# -----------------------------------------------------------------------------
def _batched_transpose(x3d):
    lead, m, n = x3d.shape
    dtype = x3d.dtype
    itemsize = jnp.dtype(dtype).itemsize
    lane_dense, lb, tm, tn, vmem_limit = _plan(lead, m, n, dtype)

    # Pure-bandwidth op hint for XLA's scheduler.
    cost = pl.CostEstimate(flops=0, transcendentals=0,
                           bytes_accessed=2 * lead * m * n * itemsize)

    if lane_dense:
        r = (tn * m) // 128
        nr = (n * m) // 128
        grid = (_cdiv(lead, lb), n // tn)
        y = pl.pallas_call(
            _transpose_lane_dense_kernel,
            out_shape=jax.ShapeDtypeStruct((lead, nr, 128), dtype),
            grid=grid,
            in_specs=[pl.BlockSpec((lb, m, tn), lambda li, ni: (li, 0, ni))],
            out_specs=pl.BlockSpec((lb, r, 128), lambda li, ni: (li, ni, 0)),
            compiler_params=pltpu.CompilerParams(
                dimension_semantics=("parallel", "parallel"),
                vmem_limit_bytes=vmem_limit),
            cost_estimate=cost,
        )(x3d)
        return y.reshape(lead, n, m)          # metadata-only un-flatten

    grid = (_cdiv(lead, lb), _cdiv(m, tm), _cdiv(n, tn))
    return pl.pallas_call(
        _transpose_kernel,
        out_shape=jax.ShapeDtypeStruct((lead, n, m), dtype),
        grid=grid,
        in_specs=[pl.BlockSpec((lb, tm, tn), lambda li, mi, ni: (li, mi, ni))],
        out_specs=pl.BlockSpec((lb, tn, tm), lambda li, mi, ni: (li, ni, mi)),
        compiler_params=pltpu.CompilerParams(
            dimension_semantics=("parallel", "parallel", "parallel"),
            vmem_limit_bytes=vmem_limit),
        cost_estimate=cost,
    )(x3d)


# -----------------------------------------------------------------------------
# Public API: torch.Tensor.permute equivalent
# -----------------------------------------------------------------------------
def permute(x, axes):
    """Pallas-backed equivalent of torch.Tensor.permute(*axes)."""
    x = jnp.asarray(x)
    ndim = x.ndim
    axes = tuple(int(a) + ndim if int(a) < 0 else int(a) for a in axes)
    assert sorted(axes) == list(range(ndim)), "invalid permutation"
    if axes == tuple(range(ndim)):
        return x

    # Longest identity prefix (leading batch axes that stay put).
    k = 0
    while k < ndim and axes[k] == k:
        k += 1

    # Is the tail a rotation of two contiguous axis groups?
    #   axes[k:] == (s, ..., ndim-1, k, ..., s-1)
    # Covers VMamba's Permute(0, 2, 3, 1) and Permute(0, 3, 1, 2).
    tail = axes[k:]
    s = tail[0]
    expected = tuple(range(s, ndim)) + tuple(range(k, s))
    if k < s < ndim and tail == expected:
        lead = 1
        for d in x.shape[:k]:
            lead *= d
        m = 1
        for d in x.shape[k:s]:
            m *= d
        n = 1
        for d in x.shape[s:ndim]:
            n *= d
        out_shape = tuple(x.shape[a] for a in axes)
        if lead == 0 or m == 0 or n == 0:
            return jnp.transpose(x, axes)      # degenerate (empty) tensor
        if m == 1 or n == 1:
            return jnp.reshape(x, out_shape)   # pure reshape, no data movement
        x3d = jnp.reshape(x, (lead, m, n))     # contiguous-group merge (free)
        y3d = _batched_transpose(x3d)          # Pallas hot path
        return jnp.reshape(y3d, out_shape)     # contiguous-group split (free)

    # TODO(synk): general permutations that are not a two-group rotation behind
    # an identity prefix have no single clean 2-D Pallas tiling here; delegate
    # those to XLA's transpose.
    return jnp.transpose(x, axes)


class Permute:
    """JAX/Pallas equivalent of VMamba's `Permute(nn.Module)` (no parameters)."""

    def __init__(self, *args):
        self.args = tuple(args)

    def __call__(self, x):
        return permute(x, self.args)


if __name__ == "__main__":
    key = jax.random.PRNGKey(0)

    # NCHW -> NHWC (VMamba's Permute(0, 2, 3, 1)) and its inverse, f32.
    B, C, H, W = 2, 8, 16, 16
    x = jax.random.normal(key, (B, C, H, W), dtype=jnp.float32)

    y = jax.block_until_ready(Permute(0, 2, 3, 1)(x))
    assert y.shape == (B, H, W, C), y.shape
    assert y.dtype == x.dtype
    assert bool(jnp.array_equal(y, jnp.transpose(x, (0, 2, 3, 1))))

    z = jax.block_until_ready(Permute(0, 3, 1, 2)(y))
    assert z.shape == (B, C, H, W), z.shape
    assert bool(jnp.array_equal(z, x))

    # Same permute under jit: the lane-dense gate is decided by the eager
    # import-time probe, so the fast path stays enabled inside traces.
    yj = jax.block_until_ready(jax.jit(Permute(0, 2, 3, 1))(x))
    assert bool(jnp.array_equal(yj, jnp.transpose(x, (0, 2, 3, 1))))

    # bf16 NCHW -> NHWC (lane-dense if the bf16 probe passed, else plain path).
    xb = jax.random.normal(key, (2, 16, 16, 8)).astype(jnp.bfloat16)
    yb = jax.block_until_ready(Permute(0, 2, 3, 1)(xb))
    assert yb.shape == (2, 16, 8, 16)
    assert bool(jnp.array_equal(yb, jnp.transpose(xb, (0, 2, 3, 1))))

    # 3-D two-group rotation with no identity prefix.
    x3 = jax.random.normal(key, (4, 8, 32), dtype=jnp.float32)
    y3 = jax.block_until_ready(permute(x3, (1, 2, 0)))
    assert bool(jnp.array_equal(y3, jnp.transpose(x3, (1, 2, 0))))

    # Permutation that is not a two-group rotation -> XLA fallback path.
    y4 = jax.block_until_ready(permute(x, (0, 2, 1, 3)))
    assert bool(jnp.array_equal(y4, jnp.transpose(x, (0, 2, 1, 3))))

    print("KERNEL_OK")
</pallas_src>

<mosaic_0001>
module attributes {stable_mosaic.version = 11 : i64} {
  func.func @_transpose_kernel(%arg0: i32, %arg1: i32, %arg2: i32, %arg3: memref<2x8x256xf32, #tpu.memory_space<vmem>>, %arg4: memref<2x256x8xf32, #tpu.memory_space<vmem>>) attributes {dimension_semantics = [#tpu.dimension_semantics<parallel>, #tpu.dimension_semantics<parallel>, #tpu.dimension_semantics<parallel>], iteration_bounds = array<i64: 1, 1, 1>, scalar_prefetch = 0 : i64, scratch_operands = 0 : i64, tpu.core_type = #tpu.core_type<tc>, window_params = [{transform_indices = @transform_0, window_bounds = array<i64: 2, 8, 256>}, {transform_indices = @transform_1, window_bounds = array<i64: 2, 256, 8>}]} {
    %c0 = arith.constant 0 : index
    %c0_0 = arith.constant 0 : index
    %c0_1 = arith.constant 0 : index
    %0 = vector.load %arg3[%c0, %c0_0, %c0_1] : memref<2x8x256xf32, #tpu.memory_space<vmem>>, vector<2x8x256xf32>
    %1 = tpu.transpose %0, [0, 2, 1] : vector<2x8x256xf32> -> vector<2x256x8xf32>
    %c0_2 = arith.constant 0 : index
    %c0_3 = arith.constant 0 : index
    %c0_4 = arith.constant 0 : index
    %2 = vector.load %arg4[%c0_2, %c0_3, %c0_4] : memref<2x256x8xf32, #tpu.memory_space<vmem>>, vector<2x256x8xf32>
    tpu.vector_store %arg4[%c0_2, %c0_3, %c0_4], %1 {strides = array<i32>} : memref<2x256x8xf32, #tpu.memory_space<vmem>>, vector<2x256x8xf32>,
    return
  }
  func.func @transform_0(%arg0: i32, %arg1: i32, %arg2: i32) -> (i32, i32, i32) {
    %c0_i32 = arith.constant 0 : i32
    return %arg0, %arg1, %arg2 : i32, i32, i32
  }
  func.func @transform_1(%arg0: i32, %arg1: i32, %arg2: i32) -> (i32, i32, i32) {
    %c0_i32 = arith.constant 0 : i32
    return %arg0, %arg2, %arg1 : i32, i32, i32
  }
}

</mosaic_0001>

<llo_original>
// kernel: tpu_custom_call.1
$region0: #{tpu_custom_call.1}
  #allocation0 [shape = 'u32[]', space=smem, size = 0x4, offset = 0x4, fixed_abs, tag = 'smem constant byte address 0x4 - core index']
  #allocation1 [shape = 'u32[144,128]{1,0:T(1,128)}', space=vmem, size = 0x12000, scoped, tag = 'internal scratch']
  %s0 = inlined_call_operand.hbm [shape: f32[2,8,256], index: 0, kind: input, shape index: {}]
  %s1 = inlined_call_operand.vmem [shape: f32[2,256,8], index: 1, kind: output, shape index: {}]
  %s2 = sld [smem:[#allocation0]]
  $region18: #{tpu_custom_call.1} parent=0
    _
  %s4 = ssub.s32 1, %s2
  %s5 = scalar_select 0, %s4, %s2
  $region1: #{tpu_custom_call.1} parent=0
    #allocation2 [shape = 'u8[16384]{0}', space=vmem, size = 0x4000, scoped, tag = 'input window, operand 0, single buffered']
    #allocation3 [shape = 's32[1]{0}', space=sflag, size = 0x4, scoped, tag = 'scoped memory for tpu_custom_call.1']
    %6 = vsyncpa [#allocation3], 0
    // Predicated region
    $region2: #{tpu_custom_call.1} parent=1 // pred_check
      _
    $region3: #{tpu_custom_call.1} parent=1 // pred_check_branch
      %8 = sbr.rel (0) target = $region5
    $region4: #{tpu_custom_call.1} parent=1 // pred_region
      %s10 = ssub.s32 512, 512
      %11 = vsyncadd [#allocation3], %s10
      %s12 = sshll.u32 [#allocation2], 4
      %s13 = int_to_ptr.vmem [resolvable:$true] %s12
      %18 = dma.hbm_to_vmem [thread:$0]  %s0, 512, %s13, [#allocation3], 256, 256, 16
    $region5: #{tpu_custom_call.1} parent=1 // pred_fallthru
      _
    // Predicated region
    $region6: #{tpu_custom_call.1} parent=1 // pred_check
      _
    $region7: #{tpu_custom_call.1} parent=1 // pred_check_branch
      %20 = sbr.rel (0) target = $region9
    $region8: #{tpu_custom_call.1} parent=1 // pred_region
      %21 = dma.done [#allocation3], 512
    $region9: #{tpu_custom_call.1} parent=1 // pred_fallthru
      _
    %v22 = vld [vmem:[#allocation2] sm:$0xff]
    %v23 = vld [vmem:[#allocation2 + $0x8] sm:$0xff]
    %v24 = vld [vmem:[#allocation2 + $0x10] sm:$0xff]
    %v25 = vld [vmem:[#allocation2 + $0x18] sm:$0xff]
    %26 = vxpose.xlu0.b32.start [1/16] %v22, 128
    %27 = vxpose.xlu0.b32.cont [2/16] 0.0, 128
    %28 = vxpose.xlu0.b32.cont [3/16] 0.0, 128
    %29 = vxpose.xlu0.b32.cont [4/16] 0.0, 128
    %30 = vxpose.xlu0.b32.cont [5/16] 0.0, 128
    %31 = vxpose.xlu0.b32.cont [6/16] 0.0, 128
    %32 = vxpose.xlu0.b32.cont [7/16] 0.0, 128
    %33 = vxpose.xlu0.b32.cont [8/16] 0.0, 128
    %34 = vxpose.xlu0.b32.cont [9/16] 0.0, 128
    %35 = vxpose.xlu0.b32.cont [10/16] 0.0, 128
    %36 = vxpose.xlu0.b32.cont [11/16] 0.0, 128
    %37 = vxpose.xlu0.b32.cont [12/16] 0.0, 128
    %38 = vxpose.xlu0.b32.cont [13/16] 0.0, 128
    %39 = vxpose.xlu0.b32.cont [14/16] 0.0, 128
    %40 = vxpose.xlu0.b32.cont [15/16] 0.0, 128
    %41 = vxpose.xlu0.b32.end [16/16] 0.0, 128
    %v42 = vpop.trf.xlu0
    %v43 = vpop.trf.xlu0
    %v44 = vpop.trf.xlu0
    %v45 = vpop.trf.xlu0
    %v46 = vpop.trf.xlu0
    %v47 = vpop.trf.xlu0
    %v48 = vpop.trf.xlu0
    %v49 = vpop.trf.xlu0
    %v50 = vpop.trf.xlu0
    %v51 = vpop.trf.xlu0
    %v52 = vpop.trf.xlu0
    %v53 = vpop.trf.xlu0
    %v54 = vpop.trf.xlu0
    %v55 = vpop.trf.xlu0
    %v56 = vpop.trf.xlu0
    %v57 = vpop.trf.xlu0
    %58 = vxpose.xlu0.b32.start [1/16] %v23, 128
    %59 = vxpose.xlu0.b32.cont [2/16] 0.0, 128
    %60 = vxpose.xlu0.b32.cont [3/16] 0.0, 128
    %61 = vxpose.xlu0.b32.cont [4/16] 0.0, 128
    %62 = vxpose.xlu0.b32.cont [5/16] 0.0, 128
    %63 = vxpose.xlu0.b32.cont [6/16] 0.0, 128
    %64 = vxpose.xlu0.b32.cont [7/16] 0.0, 128
    %65 = vxpose.xlu0.b32.cont [8/16] 0.0, 128
    %66 = vxpose.xlu0.b32.cont [9/16] 0.0, 128
    %67 = vxpose.xlu0.b32.cont [10/16] 0.0, 128
    %68 = vxpose.xlu0.b32.cont [11/16] 0.0, 128
    %69 = vxpose.xlu0.b32.cont [12/16] 0.0, 128
    %70 = vxpose.xlu0.b32.cont [13/16] 0.0, 128
    %71 = vxpose.xlu0.b32.cont [14/16] 0.0, 128
    %72 = vxpose.xlu0.b32.cont [15/16] 0.0, 128
    %73 = vxpose.xlu0.b32.end [16/16] 0.0, 128
    %v74 = vpop.trf.xlu0
    %v75 = vpop.trf.xlu0
    %v76 = vpop.trf.xlu0
    %v77 = vpop.trf.xlu0
    %v78 = vpop.trf.xlu0
    %v79 = vpop.trf.xlu0
    %v80 = vpop.trf.xlu0
    %v81 = vpop.trf.xlu0
    %v82 = vpop.trf.xlu0
    %v83 = vpop.trf.xlu0
    %v84 = vpop.trf.xlu0
    %v85 = vpop.trf.xlu0
    %v86 = vpop.trf.xlu0
    %v87 = vpop.trf.xlu0
    %v88 = vpop.trf.xlu0
    %v89 = vpop.trf.xlu0
    %90 = vxpose.xlu0.b32.start [1/16] %v24, 128
    %91 = vxpose.xlu0.b32.cont [2/16] 0.0, 128
    %92 = vxpose.xlu0.b32.cont [3/16] 0.0, 128
    %93 = vxpose.xlu0.b32.cont [4/16] 0.0, 128
    %94 = vxpose.xlu0.b32.cont [5/16] 0.0, 128
    %95 = vxpose.xlu0.b32.cont [6/16] 0.0, 128
    %96 = vxpose.xlu0.b32.cont [7/16] 0.0, 128
    %97 = vxpose.xlu0.b32.cont [8/16] 0.0, 128
    %98 = vxpose.xlu0.b32.cont [9/16] 0.0, 128
    %99 = vxpose.xlu0.b32.cont [10/16] 0.0, 128
    %100 = vxpose.xlu0.b32.cont [11/16] 0.0, 128
    %101 = vxpose.xlu0.b32.cont [12/16] 0.0, 128
    %102 = vxpose.xlu0.b32.cont [13/16] 0.0, 128
    %103 = vxpose.xlu0.b32.cont [14/16] 0.0, 128
    %104 = vxpose.xlu0.b32.cont [15/16] 0.0, 128
    %105 = vxpose.xlu0.b32.end [16/16] 0.0, 128
    %v106 = vpop.trf.xlu0
    %v107 = vpop.trf.xlu0
    %v108 = vpop.trf.xlu0
    %v109 = vpop.trf.xlu0
    %v110 = vpop.trf.xlu0
    %v111 = vpop.trf.xlu0
    %v112 = vpop.trf.xlu0
    %v113 = vpop.trf.xlu0
    %v114 = vpop.trf.xlu0
    %v115 = vpop.trf.xlu0
    %v116 = vpop.trf.xlu0
    %v117 = vpop.trf.xlu0
    %v118 = vpop.trf.xlu0
    %v119 = vpop.trf.xlu0
    %v120 = vpop.trf.xlu0
    %v121 = vpop.trf.xlu0
    %122 = vxpose.xlu0.b32.start [1/16] %v25, 128
    %123 = vxpose.xlu0.b32.cont [2/16] 0.0, 128
    %124 = vxpose.xlu0.b32.cont [3/16] 0.0, 128
    %125 = vxpose.xlu0.b32.cont [4/16] 0.0, 128
    %126 = vxpose.xlu0.b32.cont [5/16] 0.0, 128
    %127 = vxpose.xlu0.b32.cont [6/16] 0.0, 128
    %128 = vxpose.xlu0.b32.cont [7/16] 0.0, 128
    %129 = vxpose.xlu0.b32.cont [8/16] 0.0, 128
    %130 = vxpose.xlu0.b32.cont [9/16] 0.0, 128
    %131 = vxpose.xlu0.b32.cont [10/16] 0.0, 128
    %132 = vxpose.xlu0.b32.cont [11/16] 0.0, 128
    %133 = vxpose.xlu0.b32.cont [12/16] 0.0, 128
    %134 = vxpose.xlu0.b32.cont [13/16] 0.0, 128
    %135 = vxpose.xlu0.b32.cont [14/16] 0.0, 128
    %136 = vxpose.xlu0.b32.cont [15/16] 0.0, 128
    %137 = vxpose.xlu0.b32.end [16/16] 0.0, 128
    %v138 = vpop.trf.xlu0
    %v139 = vpop.trf.xlu0
    %v140 = vpop.trf.xlu0
    %v141 = vpop.trf.xlu0
    %v142 = vpop.trf.xlu0
    %v143 = vpop.trf.xlu0
    %v144 = vpop.trf.xlu0
    %v145 = vpop.trf.xlu0
    %v146 = vpop.trf.xlu0
    %v147 = vpop.trf.xlu0
    %v148 = vpop.trf.xlu0
    %v149 = vpop.trf.xlu0
    %v150 = vpop.trf.xlu0
    %v151 = vpop.trf.xlu0
    %v152 = vpop.trf.xlu0
    %v153 = vpop.trf.xlu0
    %vm154 = vcmask 64512
    %155 = vst.msk [vmem:[%s1] sm:$0xff] %vm154, %v42
    %156 = vst.msk [vmem:[%s1 + $0x8] sm:$0xff] %vm154, %v43
    %157 = vst.msk [vmem:[%s1 + $0x10] sm:$0xff] %vm154, %v44
    %158 = vst.msk [vmem:[%s1 + $0x18] sm:$0xff] %vm154, %v45
    %159 = vst.msk [vmem:[%s1 + $0x20] sm:$0xff] %vm154, %v46
    %160 = vst.msk [vmem:[%s1 + $0x28] sm:$0xff] %vm154, %v47
    %161 = vst.msk [vmem:[%s1 + $0x30] sm:$0xff] %vm154, %v48
    %162 = vst.msk [vmem:[%s1 + $0x38] sm:$0xff] %vm154, %v49
    %163 = vst.msk [vmem:[%s1 + $0x40] sm:$0xff] %vm154, %v50
    %164 = vst.msk [vmem:[%s1 + $0x48] sm:$0xff] %vm154, %v51
    %165 = vst.msk [vmem:[%s1 + $0x50] sm:$0xff] %vm154, %v52
    %166 = vst.msk [vmem:[%s1 + $0x58] sm:$0xff] %vm154, %v53
    %167 = vst.msk [vmem:[%s1 + $0x60] sm:$0xff] %vm154, %v54
    %168 = vst.msk [vmem:[%s1 + $0x68] sm:$0xff] %vm154, %v55
    %169 = vst.msk [vmem:[%s1 + $0x70] sm:$0xff] %vm154, %v56
    %170 = vst.msk [vmem:[%s1 + $0x78] sm:$0xff] %vm154, %v57
    %171 = vst.msk [vmem:[%s1 + $0x80] sm:$0xff] %vm154, %v74
    %172 = vst.msk [vmem:[%s1 + $0x88] sm:$0xff] %vm154, %v75
    %173 = vst.msk [vmem:[%s1 + $0x90] sm:$0xff] %vm154, %v76
    %174 = vst.msk [vmem:[%s1 + $0x98] sm:$0xff] %vm154, %v77
    %175 = vst.msk [vmem:[%s1 + $0xa0] sm:$0xff] %vm154, %v78
    %176 = vst.msk [vmem:[%s1 + $0xa8] sm:$0xff] %vm154, %v79
    %177 = vst.msk [vmem:[%s1 + $0xb0] sm:$0xff] %vm154, %v80
    %178 = vst.msk [vmem:[%s1 + $0xb8] sm:$0xff] %vm154, %v81
    %179 = vst.msk [vmem:[%s1 + $0xc0] sm:$0xff] %vm154, %v82
    %180 = vst.msk [vmem:[%s1 + $0xc8] sm:$0xff] %vm154, %v83
    %181 = vst.msk [vmem:[%s1 + $0xd0] sm:$0xff] %vm154, %v84
    %182 = vst.msk [vmem:[%s1 + $0xd8] sm:$0xff] %vm154, %v85
    %183 = vst.msk [vmem:[%s1 + $0xe0] sm:$0xff] %vm154, %v86
    %184 = vst.msk [vmem:[%s1 + $0xe8] sm:$0xff] %vm154, %v87
    %185 = vst.msk [vmem:[%s1 + $0xf0] sm:$0xff] %vm154, %v88
    %186 = vst.msk [vmem:[%s1 + $0xf8] sm:$0xff] %vm154, %v89
    %187 = vst.msk [vmem:[%s1 + $0x100] sm:$0xff] %vm154, %v106
    %188 = vst.msk [vmem:[%s1 + $0x108] sm:$0xff] %vm154, %v107
    %189 = vst.msk [vmem:[%s1 + $0x110] sm:$0xff] %vm154, %v108
    %190 = vst.msk [vmem:[%s1 + $0x118] sm:$0xff] %vm154, %v109
    %191 = vst.msk [vmem:[%s1 + $0x120] sm:$0xff] %vm154, %v110
    %192 = vst.msk [vmem:[%s1 + $0x128] sm:$0xff] %vm154, %v111
    %193 = vst.msk [vmem:[%s1 + $0x130] sm:$0xff] %vm154, %v112
    %194 = vst.msk [vmem:[%s1 + $0x138] sm:$0xff] %vm154, %v113
    %195 = vst.msk [vmem:[%s1 + $0x140] sm:$0xff] %vm154, %v114
    %196 = vst.msk [vmem:[%s1 + $0x148] sm:$0xff] %vm154, %v115
    %197 = vst.msk [vmem:[%s1 + $0x150] sm:$0xff] %vm154, %v116
    %198 = vst.msk [vmem:[%s1 + $0x158] sm:$0xff] %vm154, %v117
    %199 = vst.msk [vmem:[%s1 + $0x160] sm:$0xff] %vm154, %v118
    %200 = vst.msk [vmem:[%s1 + $0x168] sm:$0xff] %vm154, %v119
    %201 = vst.msk [vmem:[%s1 + $0x170] sm:$0xff] %vm154, %v120
    %202 = vst.msk [vmem:[%s1 + $0x178] sm:$0xff] %vm154, %v121
    %203 = vst.msk [vmem:[%s1 + $0x180] sm:$0xff] %vm154, %v138
    %204 = vst.msk [vmem:[%s1 + $0x188] sm:$0xff] %vm154, %v139
    %205 = vst.msk [vmem:[%s1 + $0x190] sm:$0xff] %vm154, %v140
    %206 = vst.msk [vmem:[%s1 + $0x198] sm:$0xff] %vm154, %v141
    %207 = vst.msk [vmem:[%s1 + $0x1a0] sm:$0xff] %vm154, %v142
    %208 = vst.msk [vmem:[%s1 + $0x1a8] sm:$0xff] %vm154, %v143
    %209 = vst.msk [vmem:[%s1 + $0x1b0] sm:$0xff] %vm154, %v144
    %210 = vst.msk [vmem:[%s1 + $0x1b8] sm:$0xff] %vm154, %v145
    %211 = vst.msk [vmem:[%s1 + $0x1c0] sm:$0xff] %vm154, %v146
    %212 = vst.msk [vmem:[%s1 + $0x1c8] sm:$0xff] %vm154, %v147
    %213 = vst.msk [vmem:[%s1 + $0x1d0] sm:$0xff] %vm154, %v148
    %214 = vst.msk [vmem:[%s1 + $0x1d8] sm:$0xff] %vm154, %v149
    %215 = vst.msk [vmem:[%s1 + $0x1e0] sm:$0xff] %vm154, %v150
    %216 = vst.msk [vmem:[%s1 + $0x1e8] sm:$0xff] %vm154, %v151
    %217 = vst.msk [vmem:[%s1 + $0x1f0] sm:$0xff] %vm154, %v152
    %218 = vst.msk [vmem:[%s1 + $0x1f8] sm:$0xff] %vm154, %v153
    // Predicated region
    $region10: #{tpu_custom_call.1} parent=1 // pred_check
      _
    $region11: #{tpu_custom_call.1} parent=1 // pred_check_branch
      %220 = sbr.rel (0) target = $region13
    $region12: #{tpu_custom_call.1} parent=1 // pred_region
      _
    $region13: #{tpu_custom_call.1} parent=1 // pred_fallthru
      _
    // Predicated region
    $region14: #{tpu_custom_call.1} parent=1 // pred_check
      _
    $region15: #{tpu_custom_call.1} parent=1 // pred_check_branch
      %222 = sbr.rel (0) target = $region17
    $region16: #{tpu_custom_call.1} parent=1 // pred_region
      _
    $region17: #{tpu_custom_call.1} parent=1 // pred_fallthru
      _
    %223 = vsyncpa [#allocation3], 1

</llo_original>
